<compile_context>
chip_gen: v5e
topology: v5e:2x2
jax: 0.10.0
libtpu: 0.0.40
codegen_flags: <defaults>
</compile_context>

<pallas_src>
import jax
import jax.numpy as jnp
from jax import lax
from jax.experimental import pallas as pl
from jax.experimental.pallas import tpu as pltpu

EPS = 1e-5
_LANE = 128
_VMEM_LIMIT = 32 * 1024 * 1024  # well within scoped VMEM on v5e / v6e / v7x


def _round_up(x, m):
    return ((x + m - 1) // m) * m


# ----------------------------- kernels --------------------------------------


def _layer1(s_ref, a_ref, w1s_ref, w1a_ref, b1_ref):
    """h1 = ReLU(states @ W1[:sdim] + actions @ W1[sdim:] + b1)  (concat-free)."""
    h = jnp.dot(s_ref[...], w1s_ref[...], preferred_element_type=jnp.float32)
    h = h + jnp.dot(a_ref[...], w1a_ref[...], preferred_element_type=jnp.float32)
    return jnp.maximum(h + b1_ref[...], 0.0)


def _row_mask(batch, tile):
    rows = pl.program_id(0) * tile + lax.broadcasted_iota(jnp.int32, (tile, 1), 0)
    return (rows < batch).astype(jnp.float32)


def _make_stats1_kernel(batch, tile, need_mask):
    def kernel(s_ref, a_ref, w1s_ref, w1a_ref, b1_ref, sum_ref, ssq_ref):
        @pl.when(pl.program_id(0) == 0)
        def _():
            sum_ref[...] = jnp.zeros_like(sum_ref)
            ssq_ref[...] = jnp.zeros_like(ssq_ref)

        h1 = _layer1(s_ref, a_ref, w1s_ref, w1a_ref, b1_ref)
        hm = h1 * _row_mask(batch, tile) if need_mask else h1
        sum_ref[...] += jnp.sum(hm, axis=0, keepdims=True)
        ssq_ref[...] += jnp.sum(hm * h1, axis=0, keepdims=True)

    return kernel


def _make_stats2_kernel(batch, tile, need_mask):
    def kernel(s_ref, a_ref, w1s_ref, w1a_ref, b1_ref, w2_ref, b2_ref,
               sum_ref, ssq_ref):
        @pl.when(pl.program_id(0) == 0)
        def _():
            sum_ref[...] = jnp.zeros_like(sum_ref)
            ssq_ref[...] = jnp.zeros_like(ssq_ref)

        h1 = _layer1(s_ref, a_ref, w1s_ref, w1a_ref, b1_ref)
        h2 = jnp.maximum(
            jnp.dot(h1, w2_ref[...], preferred_element_type=jnp.float32) + b2_ref[...],
            0.0)
        hm = h2 * _row_mask(batch, tile) if need_mask else h2
        sum_ref[...] += jnp.sum(hm, axis=0, keepdims=True)
        ssq_ref[...] += jnp.sum(hm * h2, axis=0, keepdims=True)

    return kernel


def _final_kernel(s_ref, a_ref, w1s_ref, w1a_ref, b1_ref, w2_ref, b2_ref,
                  w3_ref, b3_ref, out_ref):
    h1 = _layer1(s_ref, a_ref, w1s_ref, w1a_ref, b1_ref)
    h2 = jnp.maximum(
        jnp.dot(h1, w2_ref[...], preferred_element_type=jnp.float32) + b2_ref[...],
        0.0)
    y = jnp.dot(h2, w3_ref[...], preferred_element_type=jnp.float32) + b3_ref[...]
    out_ref[...] = y.astype(out_ref.dtype)


# --------------------------- wrapper glue ------------------------------------


def _bn_scale_shift(sum_vec, ssq_vec, count, gamma, beta):
    """Training-mode BN (biased var) fused to a single scale/shift pair."""
    mean = sum_vec / count
    var = jnp.maximum(ssq_vec / count - mean * mean, 0.0)
    scale = gamma * lax.rsqrt(var + EPS)
    shift = beta - mean * scale
    return scale, shift


def critic_forward(states, actions, params, *, max_tile=512):
    """states: [B, state_dim], actions: [B, action_dim*num_agents] -> [B, 1]."""
    states = states.astype(jnp.float32)
    actions = actions.astype(jnp.float32)
    B, sdim = states.shape
    adim = actions.shape[1]

    tile = min(max_tile, _round_up(B, 8))
    b_pad = _round_up(B, tile)
    need_mask = b_pad != B
    nt = b_pad // tile
    if need_mask:
        states = jnp.pad(states, ((0, b_pad - B), (0, 0)))
        actions = jnp.pad(actions, ((0, b_pad - B), (0, 0)))

    # Split the layer-1 weight once -> no input concatenation needed.
    w1s = params["w1"][:sdim]
    w1a = params["w1"][sdim:]
    b1 = params["b1"]

    def row_spec(width):
        return pl.BlockSpec((tile, width), lambda i: (i, 0))

    def full_spec(arr):
        return pl.BlockSpec(arr.shape, lambda i: (0,) * arr.ndim)

    def acc_spec(width):
        # Same block for every grid step -> VMEM-resident accumulator.
        return pl.BlockSpec((1, width), lambda i: (0, 0))

    cp_reduce = pltpu.CompilerParams(dimension_semantics=("arbitrary",),
                                     vmem_limit_bytes=_VMEM_LIMIT)
    cp_parallel = pltpu.CompilerParams(dimension_semantics=("parallel",),
                                       vmem_limit_bytes=_VMEM_LIMIT)

    # ---- pass 1: batch statistics of h1 = ReLU(x @ W1 + b1) ----
    sum1, ssq1 = pl.pallas_call(
        _make_stats1_kernel(B, tile, need_mask),
        grid=(nt,),
        out_shape=(jax.ShapeDtypeStruct((1, 256), jnp.float32),
                   jax.ShapeDtypeStruct((1, 256), jnp.float32)),
        in_specs=[row_spec(sdim), row_spec(adim),
                  full_spec(w1s), full_spec(w1a), full_spec(b1)],
        out_specs=(acc_spec(256), acc_spec(256)),
        compiler_params=cp_reduce,
    )(states, actions, w1s, w1a, b1)

    scale1, shift1 = _bn_scale_shift(sum1, ssq1, B, params["g1"], params["be1"])
    # Fold BN1 into layer 2:  BN1(h1) @ W2 + b2 == h1 @ W2f + b2f
    w2f = params["w2"] * scale1.reshape(-1, 1)
    b2f = params["b2"] + shift1 @ params["w2"]

    # ---- pass 2: batch statistics of h2 = ReLU(h1 @ W2f + b2f) ----
    sum2, ssq2 = pl.pallas_call(
        _make_stats2_kernel(B, tile, need_mask),
        grid=(nt,),
        out_shape=(jax.ShapeDtypeStruct((1, 64), jnp.float32),
                   jax.ShapeDtypeStruct((1, 64), jnp.float32)),
        in_specs=[row_spec(sdim), row_spec(adim),
                  full_spec(w1s), full_spec(w1a), full_spec(b1),
                  full_spec(w2f), full_spec(b2f)],
        out_specs=(acc_spec(64), acc_spec(64)),
        compiler_params=cp_reduce,
    )(states, actions, w1s, w1a, b1, w2f, b2f)

    scale2, shift2 = _bn_scale_shift(sum2, ssq2, B, params["g2"], params["be2"])
    # Lane-dense layer 3: pad [64,1] -> [64,128] and fold BN2 into it.
    w3p = jnp.pad(params["w3"], ((0, 0), (0, _LANE - params["w3"].shape[1])))
    b3p = jnp.pad(params["b3"], ((0, 0), (0, _LANE - params["b3"].shape[1])))
    w3f = w3p * scale2.reshape(-1, 1)
    b3f = b3p + shift2 @ w3p

    # ---- pass 3: normalized forward, lane-dense output ----
    out = pl.pallas_call(
        _final_kernel,
        grid=(nt,),
        out_shape=jax.ShapeDtypeStruct((b_pad, _LANE), jnp.float32),
        in_specs=[row_spec(sdim), row_spec(adim),
                  full_spec(w1s), full_spec(w1a), full_spec(b1),
                  full_spec(w2f), full_spec(b2f), full_spec(w3f), full_spec(b3f)],
        out_specs=pl.BlockSpec((tile, _LANE), lambda i: (i, 0)),
        compiler_params=cp_parallel,
    )(states, actions, w1s, w1a, b1, w2f, b2f, w3f, b3f)

    return out[:B, :1]


# ---------------------------- params / reference -----------------------------


def init_critic_params(key, state_dim, action_dim, num_agents, hidden_dim=256):
    """Deterministic PyTorch-default-style init. Weights stored as [in, out]."""
    input_dim = state_dim + action_dim * num_agents
    dims = [(input_dim, 256), (256, 64), (64, 1)]
    keys = jax.random.split(key, 2 * len(dims))
    params = {}
    for i, (fan_in, fan_out) in enumerate(dims):
        bound = 1.0 / (fan_in ** 0.5)
        params[f"w{i + 1}"] = jax.random.uniform(
            keys[2 * i], (fan_in, fan_out), minval=-bound, maxval=bound,
            dtype=jnp.float32)
        params[f"b{i + 1}"] = jax.random.uniform(
            keys[2 * i + 1], (1, fan_out), minval=-bound, maxval=bound,
            dtype=jnp.float32)
    # BatchNorm affine params (PyTorch default gamma=1, beta=0).
    params["g1"] = jnp.ones((1, 256), jnp.float32)
    params["be1"] = jnp.zeros((1, 256), jnp.float32)
    params["g2"] = jnp.ones((1, 64), jnp.float32)
    params["be2"] = jnp.zeros((1, 64), jnp.float32)
    return params


def critic_reference(states, actions, params):
    """Pure-JAX reference of the PyTorch forward (training-mode BN)."""
    x = jnp.concatenate([states, actions], axis=1).astype(jnp.float32)
    h = jnp.maximum(x @ params["w1"] + params["b1"], 0.0)
    m = h.mean(0, keepdims=True)
    v = ((h - m) ** 2).mean(0, keepdims=True)
    h = (h - m) * lax.rsqrt(v + EPS) * params["g1"] + params["be1"]
    h = jnp.maximum(h @ params["w2"] + params["b2"], 0.0)
    m = h.mean(0, keepdims=True)
    v = ((h - m) ** 2).mean(0, keepdims=True)
    h = (h - m) * lax.rsqrt(v + EPS) * params["g2"] + params["be2"]
    return h @ params["w3"] + params["b3"]


if __name__ == "__main__":
    # Small, forward-consistent shapes.
    batch = 8
    state_dim = 16
    action_dim = 4
    num_agents = 2

    key = jax.random.PRNGKey(0)
    k_s, k_a, k_p = jax.random.split(key, 3)

    states = jax.random.normal(k_s, (batch, state_dim), dtype=jnp.float32)
    actions = jax.random.normal(k_a, (batch, action_dim * num_agents),
                                dtype=jnp.float32)
    params = init_critic_params(k_p, state_dim, action_dim, num_agents)

    out = critic_forward(states, actions, params)
    jax.block_until_ready(out)
    assert out.shape == (batch, 1) and out.dtype == jnp.float32

    ref = critic_reference(states, actions, params)
    err = float(jnp.max(jnp.abs(out - ref)))
    assert err < 1e-2, f"mismatch vs reference: {err}"

    print("KERNEL_OK")
</pallas_src>

<mosaic_0001>
module attributes {stable_mosaic.version = 11 : i64} {
  func.func @kernel(%arg0: i32, %arg1: memref<8x16xf32, #tpu.memory_space<vmem>>, %arg2: memref<8x8xf32, #tpu.memory_space<vmem>>, %arg3: memref<16x256xf32, #tpu.memory_space<vmem>>, %arg4: memref<8x256xf32, #tpu.memory_space<vmem>>, %arg5: memref<1x256xf32, #tpu.memory_space<vmem>>, %arg6: memref<1x256xf32, #tpu.memory_space<vmem>>, %arg7: memref<1x256xf32, #tpu.memory_space<vmem>>) attributes {dimension_semantics = [#tpu.dimension_semantics<arbitrary>], iteration_bounds = array<i64: 1>, scalar_prefetch = 0 : i64, scratch_operands = 0 : i64, tpu.core_type = #tpu.core_type<tc>, window_params = [{transform_indices = @transform_0, window_bounds = array<i64: 8, 16>}, {transform_indices = @transform_1, window_bounds = array<i64: 8, 8>}, {pipeline_mode = #tpu.pipeline_mode<synchronous>, transform_indices = @transform_2, window_bounds = array<i64: 16, 256>}, {pipeline_mode = #tpu.pipeline_mode<synchronous>, transform_indices = @transform_3, window_bounds = array<i64: 8, 256>}, {pipeline_mode = #tpu.pipeline_mode<synchronous>, transform_indices = @transform_4, window_bounds = array<i64: 1, 256>}, {pipeline_mode = #tpu.pipeline_mode<synchronous>, transform_indices = @transform_5, window_bounds = array<i64: 1, 256>}, {pipeline_mode = #tpu.pipeline_mode<synchronous>, transform_indices = @transform_6, window_bounds = array<i64: 1, 256>}]} {
    %c0_i32 = arith.constant 0 : i32
    %0 = arith.cmpi eq, %arg0, %c0_i32 : i32
    %1 = arith.extui %0 : i1 to i32
    %c0_i32_0 = arith.constant 0 : i32
    %2 = arith.cmpi ne, %1, %c0_i32_0 : i32
    scf.if %2 {
      %cst_22 = arith.constant 0.000000e+00 : f32
      %26 = vector.broadcast %cst_22 : f32 to vector<1x256xf32>
      %c0_23 = arith.constant 0 : index
      %c0_24 = arith.constant 0 : index
      %27 = vector.load %arg6[%c0_23, %c0_24] : memref<1x256xf32, #tpu.memory_space<vmem>>, vector<1x256xf32>
      tpu.vector_store %arg6[%c0_23, %c0_24], %26 {strides = array<i32>} : memref<1x256xf32, #tpu.memory_space<vmem>>, vector<1x256xf32>,
      %cst_25 = arith.constant 0.000000e+00 : f32
      %28 = vector.broadcast %cst_25 : f32 to vector<1x256xf32>
      %c0_26 = arith.constant 0 : index
      %c0_27 = arith.constant 0 : index
      %29 = vector.load %arg7[%c0_26, %c0_27] : memref<1x256xf32, #tpu.memory_space<vmem>>, vector<1x256xf32>
      tpu.vector_store %arg7[%c0_26, %c0_27], %28 {strides = array<i32>} : memref<1x256xf32, #tpu.memory_space<vmem>>, vector<1x256xf32>,
    } else {
    }
    %c0 = arith.constant 0 : index
    %c0_1 = arith.constant 0 : index
    %3 = vector.load %arg1[%c0, %c0_1] : memref<8x16xf32, #tpu.memory_space<vmem>>, vector<8x16xf32>
    %c0_2 = arith.constant 0 : index
    %c0_3 = arith.constant 0 : index
    %4 = vector.load %arg3[%c0_2, %c0_3] : memref<16x256xf32, #tpu.memory_space<vmem>>, vector<16x256xf32>
    %cst = arith.constant dense<0.000000e+00> : vector<8x256xf32>
    %5 = tpu.matmul %3, %4, %cst {dimension_numbers = #tpu.dot_dimension_numbers<[1], [0], [0], [1], [0, 0, 1, 1], [], []>} : vector<8x16xf32>, vector<16x256xf32>, vector<8x256xf32> -> vector<8x256xf32>
    %c0_4 = arith.constant 0 : index
    %c0_5 = arith.constant 0 : index
    %6 = vector.load %arg2[%c0_4, %c0_5] : memref<8x8xf32, #tpu.memory_space<vmem>>, vector<8x8xf32>
    %c0_6 = arith.constant 0 : index
    %c0_7 = arith.constant 0 : index
    %7 = vector.load %arg4[%c0_6, %c0_7] : memref<8x256xf32, #tpu.memory_space<vmem>>, vector<8x256xf32>
    %cst_8 = arith.constant dense<0.000000e+00> : vector<8x256xf32>
    %8 = tpu.matmul %6, %7, %cst_8 {dimension_numbers = #tpu.dot_dimension_numbers<[1], [0], [0], [1], [0, 0, 1, 1], [], []>} : vector<8x8xf32>, vector<8x256xf32>, vector<8x256xf32> -> vector<8x256xf32>
    %9 = arith.addf %5, %8 : vector<8x256xf32>
    %c0_9 = arith.constant 0 : index
    %c0_10 = arith.constant 0 : index
    %10 = vector.load %arg5[%c0_9, %c0_10] : memref<1x256xf32, #tpu.memory_space<vmem>>, vector<1x256xf32>
    %11 = vector.broadcast %10 : vector<1x256xf32> to vector<8x256xf32>
    %12 = arith.addf %9, %11 : vector<8x256xf32>
    %cst_11 = arith.constant 0.000000e+00 : f32
    %13 = vector.broadcast %cst_11 : f32 to vector<8x256xf32>
    %14 = arith.maximumf %12, %13 : vector<8x256xf32>
    %c0_12 = arith.constant 0 : index
    %c0_13 = arith.constant 0 : index
    %15 = vector.load %arg6[%c0_12, %c0_13] : memref<1x256xf32, #tpu.memory_space<vmem>>, vector<1x256xf32>
    %cst_14 = arith.constant dense<0.000000e+00> : vector<256xf32>
    %16 = vector.multi_reduction <add>, %14, %cst_14 [0] : vector<8x256xf32> to vector<256xf32>
    %17 = vector.shape_cast %16 : vector<256xf32> to vector<1x256xf32>
    %18 = arith.addf %15, %17 : vector<1x256xf32>
    %c0_15 = arith.constant 0 : index
    %c0_16 = arith.constant 0 : index
    %19 = vector.load %arg6[%c0_15, %c0_16] : memref<1x256xf32, #tpu.memory_space<vmem>>, vector<1x256xf32>
    tpu.vector_store %arg6[%c0_15, %c0_16], %18 {strides = array<i32>} : memref<1x256xf32, #tpu.memory_space<vmem>>, vector<1x256xf32>,
    %c0_17 = arith.constant 0 : index
    %c0_18 = arith.constant 0 : index
    %20 = vector.load %arg7[%c0_17, %c0_18] : memref<1x256xf32, #tpu.memory_space<vmem>>, vector<1x256xf32>
    %21 = arith.mulf %14, %14 : vector<8x256xf32>
    %cst_19 = arith.constant dense<0.000000e+00> : vector<256xf32>
    %22 = vector.multi_reduction <add>, %21, %cst_19 [0] : vector<8x256xf32> to vector<256xf32>
    %23 = vector.shape_cast %22 : vector<256xf32> to vector<1x256xf32>
    %24 = arith.addf %20, %23 : vector<1x256xf32>
    %c0_20 = arith.constant 0 : index
    %c0_21 = arith.constant 0 : index
    %25 = vector.load %arg7[%c0_20, %c0_21] : memref<1x256xf32, #tpu.memory_space<vmem>>, vector<1x256xf32>
    tpu.vector_store %arg7[%c0_20, %c0_21], %24 {strides = array<i32>} : memref<1x256xf32, #tpu.memory_space<vmem>>, vector<1x256xf32>,
    return
  }
  func.func @transform_0(%arg0: i32) -> (i32, i32) {
    %c0_i32 = arith.constant 0 : i32
    %c0_i32_0 = arith.constant 0 : i32
    return %arg0, %c0_i32 : i32, i32
  }
  func.func @transform_1(%arg0: i32) -> (i32, i32) {
    %c0_i32 = arith.constant 0 : i32
    %c0_i32_0 = arith.constant 0 : i32
    return %arg0, %c0_i32 : i32, i32
  }
  func.func @transform_2(%arg0: i32) -> (i32, i32) {
    %c0_i32 = arith.constant 0 : i32
    %c0_i32_0 = arith.constant 0 : i32
    %c0_i32_1 = arith.constant 0 : i32
    return %c0_i32, %c0_i32_0 : i32, i32
  }
  func.func @transform_3(%arg0: i32) -> (i32, i32) {
    %c0_i32 = arith.constant 0 : i32
    %c0_i32_0 = arith.constant 0 : i32
    %c0_i32_1 = arith.constant 0 : i32
    return %c0_i32, %c0_i32_0 : i32, i32
  }
  func.func @transform_4(%arg0: i32) -> (i32, i32) {
    %c0_i32 = arith.constant 0 : i32
    %c0_i32_0 = arith.constant 0 : i32
    %c0_i32_1 = arith.constant 0 : i32
    return %c0_i32, %c0_i32_0 : i32, i32
  }
  func.func @transform_5(%arg0: i32) -> (i32, i32) {
    %c0_i32 = arith.constant 0 : i32
    %c0_i32_0 = arith.constant 0 : i32
    %c0_i32_1 = arith.constant 0 : i32
    return %c0_i32, %c0_i32_0 : i32, i32
  }
  func.func @transform_6(%arg0: i32) -> (i32, i32) {
    %c0_i32 = arith.constant 0 : i32
    %c0_i32_0 = arith.constant 0 : i32
    %c0_i32_1 = arith.constant 0 : i32
    return %c0_i32, %c0_i32_0 : i32, i32
  }
}

</mosaic_0001>

<llo_original>
// kernel: tpu_custom_call.1
$region0: #{tpu_custom_call.1}
  #allocation0 [shape = 'u32[]', space=smem, size = 0x4, offset = 0x4, fixed_abs, tag = 'smem constant byte address 0x4 - core index']
  #allocation1 [shape = 'u32[72,128]{1,0:T(1,128)}', space=vmem, size = 0x9000, scoped, tag = 'internal scratch']
  %s0 = inlined_call_operand.hbm [shape: f32[8,16], index: 0, kind: input, shape index: {}]
  %s1 = inlined_call_operand.hbm [shape: f32[8,8], index: 1, kind: input, shape index: {}]
  %s2 = inlined_call_operand.hbm [shape: f32[16,256], index: 2, kind: input, shape index: {}]
  %s3 = inlined_call_operand.hbm [shape: f32[8,256], index: 3, kind: input, shape index: {}]
  %s4 = inlined_call_operand.vmem [shape: f32[1,256], index: 4, kind: input, shape index: {}]
  %s5 = inlined_call_operand.hbm [shape: f32[1,256], index: 5, kind: output, shape index: {0}]
  %s6 = inlined_call_operand.hbm [shape: f32[1,256], index: 6, kind: output, shape index: {1}]
  %7 = xla_tuple %s5, %s6
  %s8 = sld [smem:[#allocation0]]
  $region58: #{tpu_custom_call.1} parent=0
    _
  %s10 = ssub.s32 1, %s8
  %s11 = scalar_select 0, %s10, %s8
  $region1: #{tpu_custom_call.1} parent=0
    #allocation2 [shape = 'u8[4096]{0}', space=vmem, size = 0x1000, scoped, tag = 'input window, operand 0, single buffered']
    #allocation3 [shape = 's32[1]{0}', space=sflag, size = 0x4, scoped, tag = 'scoped memory for tpu_custom_call.1']
    #allocation4 [shape = 's32[1]{0}', space=sflag, size = 0x4, scoped, tag = 'scoped memory for tpu_custom_call.1']
    #allocation5 [shape = 'u8[4096]{0}', space=vmem, size = 0x1000, scoped, tag = 'input window, operand 1, single buffered']
    #allocation6 [shape = 's32[1]{0}', space=sflag, size = 0x4, scoped, tag = 'scoped memory for tpu_custom_call.1']
    #allocation7 [shape = 'u8[16384]{0}', space=vmem, size = 0x4000, scoped, tag = 'input window, operand 2, single buffered']
    #allocation8 [shape = 'u8[8192]{0}', space=vmem, size = 0x2000, scoped, tag = 'input window, operand 3, single buffered']
    #allocation9 [shape = 's32[1]{0}', space=sflag, size = 0x4, scoped, tag = 'scoped memory for tpu_custom_call.1']
    #allocation10 [shape = 'u8[1024]{0}', space=vmem, size = 0x400, scoped, tag = 'output window, operand 0, single buffered']
    #allocation11 [shape = 'u8[1024]{0}', space=vmem, size = 0x400, scoped, tag = 'output window, operand 1, single buffered']
    #allocation12 [shape = 's32[1]{0}', space=sflag, size = 0x4, scoped, tag = 'scoped memory for tpu_custom_call.1']
    %12 = vsyncpa [#allocation3], 0
    %13 = vsyncpa [#allocation6], 0
    %14 = vsyncpa [#allocation9], 0
    %15 = vsyncpa [#allocation4], 0
    %16 = vsyncpa [#allocation12], 0
    // Predicated region
    $region2: #{tpu_custom_call.1} parent=1 // pred_check
      _
    $region3: #{tpu_custom_call.1} parent=1 // pred_check_branch
      %18 = sbr.rel (0) target = $region5
    $region4: #{tpu_custom_call.1} parent=1 // pred_region
      %20 = vsyncadd [#allocation3], 0
      %s22 = sshll.u32 %s0, 4
      %s23 = int_to_ptr.hbm [resolvable:$true] %s22
      %s24 = sshll.u32 [#allocation2], 4
      %s25 = int_to_ptr.vmem [resolvable:$true] %s24
      %27 = dma.hbm_to_vmem [thread:$0]  %s23, 128, %s25, [#allocation3]
    $region5: #{tpu_custom_call.1} parent=1 // pred_fallthru
      _
    // Predicated region
    $region6: #{tpu_custom_call.1} parent=1 // pred_check
      _
    $region7: #{tpu_custom_call.1} parent=1 // pred_check_branch
      %29 = sbr.rel (0) target = $region9
    $region8: #{tpu_custom_call.1} parent=1 // pred_region
      %31 = vsyncadd [#allocation6], 0
      %s33 = sshll.u32 %s1, 4
      %s34 = int_to_ptr.hbm [resolvable:$true] %s33
      %s35 = sshll.u32 [#allocation5], 4
      %s36 = int_to_ptr.vmem [resolvable:$true] %s35
      %38 = dma.hbm_to_vmem [thread:$0]  %s34, 128, %s36, [#allocation6]
    $region9: #{tpu_custom_call.1} parent=1 // pred_fallthru
      _
    // Predicated region
    $region10: #{tpu_custom_call.1} parent=1 // pred_check
      _
    $region11: #{tpu_custom_call.1} parent=1 // pred_check_branch
      %40 = sbr.rel (0) target = $region13
    $region12: #{tpu_custom_call.1} parent=1 // pred_region
      %42 = vsyncadd [#allocation6], 0
      %s43 = sshll.u32 %s2, 4
      %s44 = int_to_ptr.hbm [resolvable:$true] %s43
      %s45 = sshll.u32 [#allocation7], 4
      %s46 = int_to_ptr.vmem [resolvable:$true] %s45
      %51 = dma.hbm_to_vmem [thread:$0]  %s44, 512, %s46, [#allocation6], 256, 256, 16
    $region13: #{tpu_custom_call.1} parent=1 // pred_fallthru
      _
    // Predicated region
    $region14: #{tpu_custom_call.1} parent=1 // pred_check
      _
    $region15: #{tpu_custom_call.1} parent=1 // pred_check_branch
      %53 = sbr.rel (0) target = $region17
    $region16: #{tpu_custom_call.1} parent=1 // pred_region
      %55 = vsyncadd [#allocation9], 0
      %s57 = sshll.u32 %s3, 4
      %s58 = int_to_ptr.hbm [resolvable:$true] %s57
      %s59 = sshll.u32 [#allocation8], 4
      %s60 = int_to_ptr.vmem [resolvable:$true] %s59
      %62 = dma.hbm_to_vmem [thread:$0]  %s58, 256, %s60, [#allocation9]
    $region17: #{tpu_custom_call.1} parent=1 // pred_fallthru
      _
    // Predicated region
    $region18: #{tpu_custom_call.1} parent=1 // pred_check
      _
    $region19: #{tpu_custom_call.1} parent=1 // pred_check_branch
      %64 = sbr.rel (0) target = $region21
    $region20: #{tpu_custom_call.1} parent=1 // pred_region
      _
    $region21: #{tpu_custom_call.1} parent=1 // pred_fallthru
      _
    // Predicated region
    $region22: #{tpu_custom_call.1} parent=1 // pred_check
      _
    $region23: #{tpu_custom_call.1} parent=1 // pred_check_branch
      %66 = sbr.rel (0) target = $region25
    $region24: #{tpu_custom_call.1} parent=1 // pred_region
      %68 = dma.done [#allocation3], 128
    $region25: #{tpu_custom_call.1} parent=1 // pred_fallthru
      _
    // Predicated region
    $region26: #{tpu_custom_call.1} parent=1 // pred_check
      _
    $region27: #{tpu_custom_call.1} parent=1 // pred_check_branch
      %70 = sbr.rel (0) target = $region29
    $region28: #{tpu_custom_call.1} parent=1 // pred_region
      %72 = dma.done [#allocation6], 128
    $region29: #{tpu_custom_call.1} parent=1 // pred_fallthru
      _
    // Predicated region
    $region30: #{tpu_custom_call.1} parent=1 // pred_check
      _
    $region31: #{tpu_custom_call.1} parent=1 // pred_check_branch
      %74 = sbr.rel (0) target = $region33
    $region32: #{tpu_custom_call.1} parent=1 // pred_region
      %76 = dma.done [#allocation6], 512
    $region33: #{tpu_custom_call.1} parent=1 // pred_fallthru
      _
    // Predicated region
    $region34: #{tpu_custom_call.1} parent=1 // pred_check
      _
    $region35: #{tpu_custom_call.1} parent=1 // pred_check_branch
      %78 = sbr.rel (0) target = $region37
    $region36: #{tpu_custom_call.1} parent=1 // pred_region
      %80 = dma.done [#allocation9], 256
    $region37: #{tpu_custom_call.1} parent=1 // pred_fallthru
      _
    %p81 = scmp.eq.s32.totalorder 0, 0
    // Predicated region
    $region38: #{tpu_custom_call.1} parent=1 // pred_check
      %p82 = pneg %p81
    $region39: #{tpu_custom_call.1} parent=1 // pred_check_branch
      %84 = sbr.rel (%p82) target = $region41
    $region40: #{tpu_custom_call.1} parent=1 // pred_region
      %v85 = vlaneseq
      %vm86 = vcmp.ge.s32.totalorder %v85, 0
      %vm87 = vcmp.lt.s32.totalorder %v85, 256
      %vm88 = vmand %vm86, %vm87
      %89 = vst.msk [vmem:[#allocation10] sm:$0x3] %vm88, 0.0
      %90 = vst.msk [vmem:[#allocation11] sm:$0x3] %vm88, 0.0
    $region41: #{tpu_custom_call.1} parent=1 // pred_fallthru
      _
    %v91 = vld [vmem:[#allocation2] sm:$0xff]
    %v92 = vld [vmem:[#allocation7] sm:$0xff]
    %v93 = vld [vmem:[#allocation7 + $0x8] sm:$0xff]
    %v94 = vld [vmem:[#allocation7 + $0x10] sm:$0xff]
    %v95 = vld [vmem:[#allocation7 + $0x18] sm:$0xff]
    %v96 = vld [vmem:[#allocation5] sm:$0xff]
    %v97 = vld [vmem:[#allocation8] sm:$0xff]
    %v98 = vld [vmem:[#allocation8 + $0x8] sm:$0xff]
    %vm99 = vcmask 64512
    %v101 = vsel %vm99, %v96, 0
    %103 = vmatpush.msra.mxu0 0.0
    %104 = vmatpush.msra.mxu0 0.0
    %105 = vmatpush.msra.mxu0 0.0
    %106 = vmatpush.msra.mxu0 0.0
    %107 = vmatpush.msra.mxu0 0.0
    %108 = vmatpush.msra.mxu0 0.0
    %109 = vmatpush.msra.mxu0 0.0
    %110 = vmatpush.msra.mxu0 0.0
    %111 = vmatpush.msra.mxu0 0.0
    %112 = vmatpush.msra.mxu0 0.0
    %113 = vmatpush.msra.mxu0 0.0
    %114 = vmatpush.msra.mxu0 0.0
    %115 = vmatpush.msra.mxu0 0.0
    %116 = vmatpush.msra.mxu0 0.0
    %117 = vmatpush.msra.mxu0 0.0
    %118 = vmatpush.msra.mxu0 %v97
    %119 = vmatmul.f32.gmra.mxu0 %v101
    %v120 = vpop.f32.mrf.mxu0
    %v121 = vadd.f32 0.0, %v120
    %122 = vdwg.mxu0
    %123 = vmatpush.msra.mxu0 0.0
    %124 = vmatpush.msra.mxu0 0.0
    %125 = vmatpush.msra.mxu0 0.0
    %126 = vmatpush.msra.mxu0 0.0
    %127 = vmatpush.msra.mxu0 0.0
    %128 = vmatpush.msra.mxu0 0.0
    %129 = vmatpush.msra.mxu0 0.0
    %130 = vmatpush.msra.mxu0 0.0
    %131 = vmatpush.msra.mxu0 0.0
    %132 = vmatpush.msra.mxu0 0.0
    %133 = vmatpush.msra.mxu0 0.0
    %134 = vmatpush.msra.mxu0 0.0
    %135 = vmatpush.msra.mxu0 0.0
    %136 = vmatpush.msra.mxu0 0.0
    %137 = vmatpush.msra.mxu0 0.0
    %138 = vmatpush.msra.mxu0 %v98
    %139 = vmatmul.f32.gmra.mxu0 %v101
    %v140 = vpop.f32.mrf.mxu0
    %v141 = vadd.f32 0.0, %v140
    %142 = vdwg.mxu0
    %vm143 = vcmask 130048
    %v145 = vsel %vm143, %v91, 0
    %147 = vmatpush.msra.mxu0 0.0
    %148 = vmatpush.msra.mxu0 0.0
    %149 = vmatpush.msra.mxu0 0.0
    %150 = vmatpush.msra.mxu0 0.0
    %151 = vmatpush.msra.mxu0 0.0
    %152 = vmatpush.msra.mxu0 0.0
    %153 = vmatpush.msra.mxu0 0.0
    %154 = vmatpush.msra.mxu0 0.0
    %155 = vmatpush.msra.mxu0 0.0
    %156 = vmatpush.msra.mxu0 0.0
    %157 = vmatpush.msra.mxu0 0.0
    %158 = vmatpush.msra.mxu0 0.0
    %159 = vmatpush.msra.mxu0 0.0
    %160 = vmatpush.msra.mxu0 0.0
    %161 = vmatpush.msra.mxu0 %v94
    %162 = vmatpush.msra.mxu0 %v92
    %163 = vmatmul.f32.gmra.mxu0 %v145
    %v164 = vpop.f32.mrf.mxu0
    %v165 = vadd.f32 %v121, %v164
    %166 = vdwg.mxu0
    %167 = vmatpush.msra.mxu0 0.0
    %168 = vmatpush.msra.mxu0 0.0
    %169 = vmatpush.msra.mxu0 0.0
    %170 = vmatpush.msra.mxu0 0.0
    %171 = vmatpush.msra.mxu0 0.0
    %172 = vmatpush.msra.mxu0 0.0
    %173 = vmatpush.msra.mxu0 0.0
    %174 = vmatpush.msra.mxu0 0.0
    %175 = vmatpush.msra.mxu0 0.0
    %176 = vmatpush.msra.mxu0 0.0
    %177 = vmatpush.msra.mxu0 0.0
    %178 = vmatpush.msra.mxu0 0.0
    %179 = vmatpush.msra.mxu0 0.0
    %180 = vmatpush.msra.mxu0 0.0
    %181 = vmatpush.msra.mxu0 %v95
    %182 = vmatpush.msra.mxu0 %v93
    %183 = vmatmul.f32.gmra.mxu0 %v145
    %v184 = vpop.f32.mrf.mxu0
    %v185 = vadd.f32 %v141, %v184
    %186 = vdwg.mxu0
    %v187 = vld [vmem:[%s4] sm:$0x3]
    %v189 = vperm.slane %v187, 0
    %v190 = vperm.slane %v187, 1
    %v193 = vadd.f32 %v165, %v189
    %v194 = vadd.f32 %v185, %v190
    %v195 = vmax.f32 %v193, 0.0
    %v196 = vmax.f32 %v194, 0.0
    %v197 = vld [vmem:[#allocation10] sm:$0x3]
    %v198 = vrot.slane %v195, 4
    %v199 = vadd.f32 %v195, %v198
    %v200 = vrot.slane %v199, 2
    %v201 = vadd.f32 %v199, %v200
    %v202 = vrot.slane %v201, 1
    %v203 = vadd.f32 %v201, %v202
    %v204 = vrot.slane %v196, 4
    %v205 = vadd.f32 %v196, %v204
    %v206 = vrot.slane %v205, 2
    %v207 = vadd.f32 %v205, %v206
    %v208 = vrot.slane %v207, 1
    %v209 = vadd.f32 %v207, %v208
    %v212 = vrot.slane %v209, 7
    %vm213 = vcmask 1040384
    %v214 = vsel %vm213, %v203, %v212
    %v216 = vadd.f32 %v197, %v214
    %v217 = vlaneseq
    %vm218 = vcmp.ge.s32.totalorder %v217, 0
    %vm219 = vcmp.lt.s32.totalorder %v217, 256
    %vm220 = vmand %vm218, %vm219
    %221 = vst.msk [vmem:[#allocation10] sm:$0x3] %vm220, %v216
    %v222 = vld [vmem:[#allocation11] sm:$0x3]
    %v223 = vmul.f32 %v195, %v195
    %v224 = vmul.f32 %v196, %v196
    %v225 = vrot.slane %v223, 4
    %v226 = vadd.f32 %v223, %v225
    %v227 = vrot.slane %v226, 2
    %v228 = vadd.f32 %v226, %v227
    %v229 = vrot.slane %v228, 1
    %v230 = vadd.f32 %v228, %v229
    %v231 = vrot.slane %v224, 4
    %v232 = vadd.f32 %v224, %v231
    %v233 = vrot.slane %v232, 2
    %v234 = vadd.f32 %v232, %v233
    %v235 = vrot.slane %v234, 1
    %v236 = vadd.f32 %v234, %v235
    %v239 = vrot.slane %v236, 7
    %v240 = vsel %vm213, %v230, %v239
    %v242 = vadd.f32 %v222, %v240
    %243 = vst.msk [vmem:[#allocation11] sm:$0x3] %vm220, %v242
    // Predicated region
    $region42: #{tpu_custom_call.1} parent=1 // pred_check
      _
    $region43: #{tpu_custom_call.1} parent=1 // pred_check_branch
      %245 = sbr.rel (0) target = $region45
    $region44: #{tpu_custom_call.1} parent=1 // pred_region
      %247 = vsyncadd [#allocation4], 0
      %s249 = sshll.u32 [#allocation10], 4
      %s250 = int_to_ptr.vmem [resolvable:$true] %s249
      %s251 = sshll.u32 %s5, 4
      %s252 = int_to_ptr.hbm [resolvable:$true] %s251
      %254 = dma.vmem_to_hbm [thread:$0]  %s250, 32, %s252, [#allocation4]
    $region45: #{tpu_custom_call.1} parent=1 // pred_fallthru
      _
    // Predicated region
    $region46: #{tpu_custom_call.1} parent=1 // pred_check
      _
    $region47: #{tpu_custom_call.1} parent=1 // pred_check_branch
      %256 = sbr.rel (0) target = $region49
    $region48: #{tpu_custom_call.1} parent=1 // pred_region
      %258 = vsyncadd [#allocation12], 0
      %s260 = sshll.u32 [#allocation11], 4
      %s261 = int_to_ptr.vmem [resolvable:$true] %s260
      %s262 = sshll.u32 %s6, 4
      %s263 = int_to_ptr.hbm [resolvable:$true] %s262
      %265 = dma.vmem_to_hbm [thread:$0]  %s261, 32, %s263, [#allocation12]
    $region49: #{tpu_custom_call.1} parent=1 // pred_fallthru
      _
    // Predicated region
    $region50: #{tpu_custom_call.1} parent=1 // pred_check
      _
    $region51: #{tpu_custom_call.1} parent=1 // pred_check_branch
      %267 = sbr.rel (0) target = $region53
    $region52: #{tpu_custom_call.1} parent=1 // pred_region
      %269 = dma.done [#allocation4], 32
    $region53: #{tpu_custom_call.1} parent=1 // pred_fallthru
      _
    // Predicated region
    $region54: #{tpu_custom_call.1} parent=1 // pred_check
      _
    $region55: #{tpu_custom_call.1} parent=1 // pred_check_branch
      %271 = sbr.rel (0) target = $region57
    $region56: #{tpu_custom_call.1} parent=1 // pred_region
      %273 = dma.done [#allocation12], 32
    $region57: #{tpu_custom_call.1} parent=1 // pred_fallthru
      _
    %274 = vsyncpa [#allocation3], 1
    %275 = vsyncpa [#allocation6], 1
    %276 = vsyncpa [#allocation9], 1
    %277 = vsyncpa [#allocation4], 1
    %278 = vsyncpa [#allocation12], 1

</llo_original>
